<compile_context>
chip_gen: v6e
topology: v6e:2x2x1
jax: 0.10.0
libtpu: 0.0.40
codegen_flags: <defaults>
</compile_context>

<pallas_src>
import functools
import math

import jax
import jax.numpy as jnp
from jax import lax
from jax.experimental import pallas as pl
from jax.experimental.pallas import tpu as pltpu


def _round_up(x, m):
    return ((x + m - 1) // m) * m


def _vmem_budget_bytes():
    """Generation-aware VMEM limit: ~48 MiB on v7x, ~100 MiB on v5e/v6e."""
    try:
        cap = int(pltpu.get_tpu_info().vmem_capacity_bytes)
    except Exception:
        cap = 64 << 20            # conservative fallback (v7x per-TensorCore)
    return int(min(max(cap - (16 << 20), 32 << 20), 100 << 20))


# -----------------------------------------------------------------------------
# Path A ("resident"): grid (B, nq, L), L innermost.
#   hh_ref : (1, tq, d)    Hh tile for (b, q)       (constant across l)
#   u_ref  : (L, d, d)/(L, 1, d)  whole U, VMEM-resident (constant everywhere)
#   hd_ref : (1, n_k, d)   full Hd row block for b   (constant across q, l)
#   o_ref  : (1, 1, tq, n_k)
# -----------------------------------------------------------------------------
def _dense_resident_kernel(hh_ref, u_ref, hd_ref, o_ref, *, compute_dtype):
    l = pl.program_id(2)
    hh = hh_ref[0].astype(compute_dtype)                       # (tq, d)
    u = u_ref[l].astype(compute_dtype)                         # (d, d)
    t = jnp.dot(hh, u, preferred_element_type=jnp.float32).astype(compute_dtype)
    hd = hd_ref[0].astype(compute_dtype)                       # (n_k, d)
    # (tq, d) x (n_k, d) contracting dim 1 of both == t @ hd^T, no transpose.
    s = lax.dot_general(t, hd, dimension_numbers=(((1,), (1,)), ((), ())),
                        preferred_element_type=jnp.float32)
    o_ref[0, 0] = s.astype(o_ref.dtype)


def _diag_resident_kernel(hh_ref, u_ref, hd_ref, o_ref, *, compute_dtype):
    l = pl.program_id(2)
    # Elementwise scale in f32 (v5e VPU has no bf16), cast before the dot.
    t = hh_ref[0].astype(jnp.float32) * u_ref[l].astype(jnp.float32)
    t = t.astype(compute_dtype)
    hd = hd_ref[0].astype(compute_dtype)
    s = lax.dot_general(t, hd, dimension_numbers=(((1,), (1,)), ((), ())),
                        preferred_element_type=jnp.float32)
    o_ref[0, 0] = s.astype(o_ref.dtype)


# -----------------------------------------------------------------------------
# Path B ("tiled" fallback when the resident blocks don't fit VMEM):
# grid (L, B, nq, nk), k innermost "arbitrary"; Hh@U[l] cached in VMEM scratch
# at k == 0 and reused across all k tiles.
# -----------------------------------------------------------------------------
def _dense_tiled_kernel(hh_ref, u_ref, hd_ref, o_ref, tmp_ref, *, compute_dtype):
    @pl.when(pl.program_id(3) == 0)
    def _():
        hh = hh_ref[0].astype(compute_dtype)
        u = u_ref[0].astype(compute_dtype)
        tmp_ref[...] = jnp.dot(
            hh, u, preferred_element_type=jnp.float32).astype(tmp_ref.dtype)

    hd = hd_ref[0].astype(compute_dtype)
    s = lax.dot_general(tmp_ref[...], hd,
                        dimension_numbers=(((1,), (1,)), ((), ())),
                        preferred_element_type=jnp.float32)
    o_ref[0, 0] = s.astype(o_ref.dtype)


def _diag_tiled_kernel(hh_ref, u_ref, hd_ref, o_ref, tmp_ref, *, compute_dtype):
    @pl.when(pl.program_id(3) == 0)
    def _():
        scaled = hh_ref[0].astype(jnp.float32) * u_ref[0].astype(jnp.float32)
        tmp_ref[...] = scaled.astype(tmp_ref.dtype)

    hd = hd_ref[0].astype(compute_dtype)
    s = lax.dot_general(tmp_ref[...], hd,
                        dimension_numbers=(((1,), (1,)), ((), ())),
                        preferred_element_type=jnp.float32)
    o_ref[0, 0] = s.astype(o_ref.dtype)


# ---------------- wrapper ----------------

def biaffine_forward(Hh, Hd, U, *, diag=False, use_bias=False,
                     compute_dtype=None, out_dtype=jnp.float32,
                     force_tiled=False):
    """Replicates BiAffine.forward.

    Hh, Hd: [B, n, d_in]; U: [L, d, d] (or [L, 1, d] if diag) with
    d = d_in + 1 when use_bias else d_in.
    Returns [B, L, n, n] if L > 1 else [B, n, n] (out_dtype, default f32).

    compute_dtype: MXU feed dtype; defaults to bf16 for f32 inputs (f32
    accumulation on the MXU, f32 output).  Pass jnp.float32 for exact math.
    """
    B, n, _ = Hh.shape
    if use_bias:
        ones = jnp.ones((B, n, 1), dtype=Hh.dtype)
        Hh = jnp.concatenate([Hh, ones], axis=2)
        Hd = jnp.concatenate([Hd, ones], axis=2)
    d = Hh.shape[2]
    L = U.shape[0]
    du = 1 if diag else d
    assert U.shape[-1] == d, "U last dim must match (biaffine_size [+1 if bias])"
    assert U.shape[1] == du

    if compute_dtype is None:
        compute_dtype = jnp.bfloat16 if Hh.dtype == jnp.float32 else Hh.dtype
    compute_dtype = jnp.dtype(compute_dtype)

    budget = _vmem_budget_bytes()
    in_bytes = jnp.dtype(Hh.dtype).itemsize
    u_bytes = jnp.dtype(U.dtype).itemsize
    ob = jnp.dtype(out_dtype).itemsize

    # ---- try Path A (Hd + U resident) ----
    resident_ok, tq = False, None
    n_k = n if n % 128 == 0 else _round_up(n, 128)   # lane-dense output columns
    if not force_tiled:
        tq_cands = [n] if n <= 512 else [512, 256, 128]
        for tq_c in tq_cands:
            est = (2 * tq_c * d * in_bytes          # Hh double-buffered
                   + 2 * n_k * d * in_bytes         # Hd resident (dbl-buffered)
                   + 2 * L * du * d * u_bytes       # whole U resident
                   + 2 * tq_c * n_k * ob            # output block
                   + tq_c * d * 4 + tq_c * n_k * 4  # f32 intermediates
                   + (4 << 20))                     # Mosaic internal scratch
            if est <= budget:
                tq, resident_ok = tq_c, True
                break

    if resident_ok:
        n_q = n if n <= 512 else _round_up(n, tq)
        Hh_in = Hh if n_q == n else jnp.zeros((B, n_q, d), Hh.dtype).at[:, :n, :].set(Hh)
        Hd_in = Hd if n_k == n else jnp.zeros((B, n_k, d), Hd.dtype).at[:, :n, :].set(Hd)
        nq = n_q // tq

        kernel = functools.partial(
            _diag_resident_kernel if diag else _dense_resident_kernel,
            compute_dtype=compute_dtype)

        grid_spec = pltpu.PrefetchScalarGridSpec(
            num_scalar_prefetch=0,
            grid=(B, nq, L),
            in_specs=[
                pl.BlockSpec((1, tq, d), lambda b, q, l: (b, q, 0)),   # Hh tile
                pl.BlockSpec((L, du, d), lambda b, q, l: (0, 0, 0)),   # U resident
                pl.BlockSpec((1, n_k, d), lambda b, q, l: (b, 0, 0)),  # Hd resident / batch
            ],
            out_specs=pl.BlockSpec((1, 1, tq, n_k), lambda b, q, l: (b, l, q, 0)),
        )
        S_pad = pl.pallas_call(
            kernel,
            out_shape=jax.ShapeDtypeStruct((B, L, n_q, n_k), out_dtype),
            grid_spec=grid_spec,
            compiler_params=pltpu.CompilerParams(
                dimension_semantics=("parallel", "parallel", "parallel"),
                vmem_limit_bytes=budget,
            ),
        )(Hh_in, U, Hd_in)
    else:
        # ---- Path B: tiled over (q, k), scratch carries Hh @ U[l] across k ----
        tq = tk = 256
        n_q = n_k = _round_up(n, tk)
        if n_q != n:
            Hh_in = jnp.zeros((B, n_q, d), Hh.dtype).at[:, :n, :].set(Hh)
            Hd_in = jnp.zeros((B, n_k, d), Hd.dtype).at[:, :n, :].set(Hd)
        else:
            Hh_in, Hd_in = Hh, Hd
        nq = n_q // tq
        nk = n_k // tk

        kernel = functools.partial(
            _diag_tiled_kernel if diag else _dense_tiled_kernel,
            compute_dtype=compute_dtype)

        grid_spec = pltpu.PrefetchScalarGridSpec(
            num_scalar_prefetch=0,
            grid=(L, B, nq, nk),
            in_specs=[
                pl.BlockSpec((1, tq, d), lambda l, b, q, k: (b, q, 0)),   # Hh
                pl.BlockSpec((1, du, d), lambda l, b, q, k: (l, 0, 0)),   # U[l] (L DMAs total)
                pl.BlockSpec((1, tk, d), lambda l, b, q, k: (b, k, 0)),   # Hd
            ],
            out_specs=pl.BlockSpec((1, 1, tq, tk), lambda l, b, q, k: (b, l, q, k)),
            scratch_shapes=[pltpu.VMEM((tq, d), compute_dtype)],
        )
        S_pad = pl.pallas_call(
            kernel,
            out_shape=jax.ShapeDtypeStruct((B, L, n_q, n_k), out_dtype),
            grid_spec=grid_spec,
            compiler_params=pltpu.CompilerParams(
                dimension_semantics=("parallel", "parallel", "parallel", "arbitrary"),
                vmem_limit_bytes=budget,
            ),
        )(Hh_in, U, Hd_in)

    S = S_pad
    if n_q != n or n_k != n:          # slice is a no-op when nothing was padded
        S = S[:, :, :n, :n]
    if L == 1:
        S = jnp.squeeze(S, axis=1)    # matches torch .squeeze(1)
    return S


def xavier_uniform(key, shape):
    # PyTorch nn.init.xavier_uniform_ semantics for a >=2-D tensor.
    rest = 1
    for s in shape[2:]:
        rest *= int(s)
    fan_out = shape[0] * rest if len(shape) > 2 else shape[0]
    fan_in = shape[1] * rest if len(shape) > 2 else shape[1]
    bound = math.sqrt(6.0 / (fan_in + fan_out))
    return jax.random.uniform(key, shape, jnp.float32, -bound, bound)


# ---------------- reference (pure JAX) ----------------

def biaffine_ref(Hh, Hd, U, *, diag=False, use_bias=False):
    B, n, _ = Hh.shape
    if use_bias:
        ones = jnp.ones((B, n, 1), dtype=Hh.dtype)
        Hh = jnp.concatenate([Hh, ones], axis=2)
        Hd = jnp.concatenate([Hd, ones], axis=2)
    Hh4 = Hh[:, None]
    Hd4 = Hd[:, None]
    if not diag:
        S = Hh4 @ U @ jnp.swapaxes(Hd4, -1, -2)
    else:
        S = (Hh4 * U) @ jnp.swapaxes(Hd4, -1, -2)
    if S.shape[1] == 1:
        S = jnp.squeeze(S, axis=1)
    return S


if __name__ == "__main__":
    key = jax.random.PRNGKey(0)
    B, n, d = 2, 8, 32

    k1, k2, k3, k4, k5, k6, k7 = jax.random.split(key, 7)
    Hh = jax.random.normal(k1, (B, n, d), jnp.float32)
    Hd = jax.random.normal(k2, (B, n, d), jnp.float32)

    # --- case 1: label scores, L=3, dense U, exact f32 compute ---
    L = 3
    U_lab = xavier_uniform(k3, (L, d, d))
    S_lab = biaffine_forward(Hh, Hd, U_lab, diag=False, use_bias=False,
                             compute_dtype=jnp.float32)
    jax.block_until_ready(S_lab)
    ref_lab = biaffine_ref(Hh, Hd, U_lab, diag=False, use_bias=False)
    assert S_lab.shape == (B, L, n, n)
    assert jnp.allclose(S_lab, ref_lab, atol=1e-4, rtol=1e-4)

    # --- case 2: arc scores, L=1 (squeezed), diagonal U, exact f32 compute ---
    U_arc = xavier_uniform(k4, (1, 1, d))
    S_arc = biaffine_forward(Hh, Hd, U_arc, diag=True, use_bias=False,
                             compute_dtype=jnp.float32)
    jax.block_until_ready(S_arc)
    ref_arc = biaffine_ref(Hh, Hd, U_arc, diag=True, use_bias=False)
    assert S_arc.shape == (B, n, n)
    assert jnp.allclose(S_arc, ref_arc, atol=1e-4, rtol=1e-4)

    # --- case 3: dense U with bias column, default bf16 MXU fast path ---
    L3 = 2
    U_b = xavier_uniform(k5, (L3, d + 1, d + 1))
    S_b = biaffine_forward(Hh, Hd, U_b, diag=False, use_bias=True)
    jax.block_until_ready(S_b)
    ref_b = biaffine_ref(Hh, Hd, U_b, diag=False, use_bias=True)
    assert S_b.shape == (B, L3, n, n)
    assert jnp.allclose(S_b, ref_b, atol=2e-1, rtol=5e-2)

    # --- case 4/5: exercise the tiled fallback path (dense + diag), f32 ---
    S_t = biaffine_forward(Hh, Hd, U_lab, diag=False, use_bias=False,
                           compute_dtype=jnp.float32, force_tiled=True)
    jax.block_until_ready(S_t)
    assert S_t.shape == (B, L, n, n)
    assert jnp.allclose(S_t, ref_lab, atol=1e-4, rtol=1e-4)

    S_td = biaffine_forward(Hh, Hd, U_arc, diag=True, use_bias=False,
                            compute_dtype=jnp.float32, force_tiled=True)
    jax.block_until_ready(S_td)
    assert S_td.shape == (B, n, n)
    assert jnp.allclose(S_td, ref_arc, atol=1e-4, rtol=1e-4)

    # --- case 6: 128-aligned n (no wrapper padding copies at all), default bf16 ---
    n2, d2, L2 = 128, 64, 2
    Hh2 = jax.random.normal(k6, (B, n2, d2), jnp.float32)
    Hd2 = jax.random.normal(k7, (B, n2, d2), jnp.float32)
    U2 = xavier_uniform(k3, (L2, d2, d2))
    S2 = biaffine_forward(Hh2, Hd2, U2, diag=False, use_bias=False)
    jax.block_until_ready(S2)
    ref2 = biaffine_ref(Hh2, Hd2, U2, diag=False, use_bias=False)
    assert S2.shape == (B, L2, n2, n2)
    assert jnp.allclose(S2, ref2, atol=2.5e-1, rtol=5e-2)

    print("KERNEL_OK")
</pallas_src>

<mosaic_0001>
module attributes {stable_mosaic.version = 11 : i64} {
  func.func @_dense_resident_kernel(%arg0: i32, %arg1: i32, %arg2: i32, %arg3: memref<1x8x32xf32, #tpu.memory_space<vmem>>, %arg4: memref<3x32x32xf32, #tpu.memory_space<vmem>>, %arg5: memref<1x128x32xf32, #tpu.memory_space<vmem>>, %arg6: memref<1x1x8x128xf32, #tpu.memory_space<vmem>>) attributes {dimension_semantics = [#tpu.dimension_semantics<parallel>, #tpu.dimension_semantics<parallel>, #tpu.dimension_semantics<parallel>], iteration_bounds = array<i64: 2, 1, 3>, scalar_prefetch = 0 : i64, scratch_operands = 0 : i64, tpu.core_type = #tpu.core_type<tc>, window_params = [{transform_indices = @transform_0, window_bounds = array<i64: 1, 8, 32>}, {pipeline_mode = #tpu.pipeline_mode<synchronous>, transform_indices = @transform_1, window_bounds = array<i64: 3, 32, 32>}, {transform_indices = @transform_2, window_bounds = array<i64: 1, 128, 32>}, {transform_indices = @transform_3, window_bounds = array<i64: 1, 1, 8, 128>}]} {
    %c0 = arith.constant 0 : index
    %c0_0 = arith.constant 0 : index
    %c0_1 = arith.constant 0 : index
    %0 = vector.load %arg3[%c0, %c0_0, %c0_1] : memref<1x8x32xf32, #tpu.memory_space<vmem>>, vector<1x8x32xf32>
    %1 = vector.shape_cast %0 : vector<1x8x32xf32> to vector<8x32xf32>
    %2 = arith.index_cast %arg2 : i32 to index
    %c0_2 = arith.constant 0 : index
    %c0_3 = arith.constant 0 : index
    %3 = vector.load %arg4[%2, %c0_2, %c0_3] : memref<3x32x32xf32, #tpu.memory_space<vmem>>, vector<1x32x32xf32>
    %4 = vector.shape_cast %3 : vector<1x32x32xf32> to vector<32x32xf32>
    %cst = arith.constant dense<0.000000e+00> : vector<8x32xf32>
    %5 = tpu.matmul %1, %4, %cst {dimension_numbers = #tpu.dot_dimension_numbers<[1], [0], [0], [1], [0, 0, 1, 1], [], []>} : vector<8x32xf32>, vector<32x32xf32>, vector<8x32xf32> -> vector<8x32xf32>
    %c0_4 = arith.constant 0 : index
    %c0_5 = arith.constant 0 : index
    %c0_6 = arith.constant 0 : index
    %6 = vector.load %arg5[%c0_4, %c0_5, %c0_6] : memref<1x128x32xf32, #tpu.memory_space<vmem>>, vector<1x128x32xf32>
    %7 = vector.shape_cast %6 : vector<1x128x32xf32> to vector<128x32xf32>
    %cst_7 = arith.constant dense<0.000000e+00> : vector<8x128xf32>
    %8 = tpu.matmul %5, %7, %cst_7 {dimension_numbers = #tpu.dot_dimension_numbers<[1], [1], [0], [0], [0, 0, 1, 0], [], []>} : vector<8x32xf32>, vector<128x32xf32>, vector<8x128xf32> -> vector<8x128xf32>
    %c0_8 = arith.constant 0 : index
    %c0_9 = arith.constant 0 : index
    %c0_10 = arith.constant 0 : index
    %c0_11 = arith.constant 0 : index
    %9 = vector.load %arg6[%c0_8, %c0_9, %c0_10, %c0_11] : memref<1x1x8x128xf32, #tpu.memory_space<vmem>>, vector<1x1x8x128xf32>
    %10 = vector.shape_cast %9 : vector<1x1x8x128xf32> to vector<8x128xf32>
    %11 = vector.shape_cast %8 : vector<8x128xf32> to vector<1x1x8x128xf32>
    tpu.vector_store %arg6[%c0_8, %c0_9, %c0_10, %c0_11], %11 {strides = array<i32>} : memref<1x1x8x128xf32, #tpu.memory_space<vmem>>, vector<1x1x8x128xf32>,
    return
  }
  func.func @transform_0(%arg0: i32, %arg1: i32, %arg2: i32) -> (i32, i32, i32) {
    %c0_i32 = arith.constant 0 : i32
    %c0_i32_0 = arith.constant 0 : i32
    return %arg0, %arg1, %c0_i32 : i32, i32, i32
  }
  func.func @transform_1(%arg0: i32, %arg1: i32, %arg2: i32) -> (i32, i32, i32) {
    %c0_i32 = arith.constant 0 : i32
    %c0_i32_0 = arith.constant 0 : i32
    %c0_i32_1 = arith.constant 0 : i32
    %c0_i32_2 = arith.constant 0 : i32
    return %c0_i32, %c0_i32_0, %c0_i32_1 : i32, i32, i32
  }
  func.func @transform_2(%arg0: i32, %arg1: i32, %arg2: i32) -> (i32, i32, i32) {
    %c0_i32 = arith.constant 0 : i32
    %c0_i32_0 = arith.constant 0 : i32
    %c0_i32_1 = arith.constant 0 : i32
    return %arg0, %c0_i32, %c0_i32_0 : i32, i32, i32
  }
  func.func @transform_3(%arg0: i32, %arg1: i32, %arg2: i32) -> (i32, i32, i32, i32) {
    %c0_i32 = arith.constant 0 : i32
    %c0_i32_0 = arith.constant 0 : i32
    return %arg0, %arg2, %arg1, %c0_i32 : i32, i32, i32, i32
  }
}

</mosaic_0001>

<llo_original>
// kernel: tpu_custom_call.1
$region0: #{tpu_custom_call.1}
  #allocation0 [shape = 'u32[]', space=smem, size = 0x4, offset = 0x4, fixed_abs, tag = 'smem constant byte address 0x4 - core index']
  #allocation1 [shape = 'u32[144,128]{1,0:T(1,128)}', space=vmem, size = 0x12000, scoped, tag = 'internal scratch']
  %s0 = inlined_call_operand.vmem [shape: f32[2,8,32], index: 0, kind: input, shape index: {}]
  %s1 = inlined_call_operand.vmem [shape: f32[3,32,32], index: 1, kind: input, shape index: {}]
  %s2 = inlined_call_operand.vmem [shape: f32[2,128,32], index: 2, kind: input, shape index: {}]
  %s3 = inlined_call_operand.hbm [shape: f32[2,3,8,128], index: 3, kind: output, shape index: {}]
  %s4 = sld [smem:[#allocation0]]
  $region45: #{tpu_custom_call.1} parent=0
    _
  %s6 = ssub.s32 1, %s4
  %s7 = scalar_select 0, %s6, %s4
  $region1: #{tpu_custom_call.1} parent=0
    #allocation2 [shape = 'u8[8192]{0}', space=vmem, size = 0x2000, scoped, tag = 'output window, operand 0']
    #allocation3 [shape = 's32[2]{0}', space=sflag, size = 0x8, scoped, tag = 'scoped memory for tpu_custom_call.1']
    %8 = vsyncpa [#allocation3], 0
    %s9 = scalar_lea.sflag [#allocation3], 1
    %10 = vsyncpa %s9, 0
    loop: start=0, step=1, limit=8
    $region2: #{tpu_custom_call.1} parent=1 // loop_pre_header
      _
    $region3: #{tpu_custom_call.1} parent=1 // loop_header
      %s12 = sphi 0, %s16
      %p13 = scmp.ge.s32.totalorder %s12, 8
      %s19 = sphi 0, %s38
      %s20 = sphi 0, %s34
      %s21 = sphi 0, %s30
      %s22 = sphi 0, %s19
      %s23 = sphi 0, %s20
      %s24 = sphi 0, %s21
      %s25 = sphi 0, %s22
      %s26 = sphi 0, %s23
      %s27 = sphi 0, %s24
      %s43 = sphi 0, %s45
      %s46 = sphi 0, %s43
      %s47 = sphi 0, %s46
      %s63 = sphi 0, %s47
      %s67 = sphi 0, %s67
      %s69 = sphi 0, %s67
      %s70 = sphi 0, %s69
      %s84 = sphi 0, %s70
      %s90 = sphi 0, %s92
      %s93 = sphi 0, %s90
      %s94 = sphi 0, %s93
      %s110 = sphi 0, %s94
      %s120 = sphi 0, %s122
      %s123 = sphi 0, %s120
      %s124 = sphi 0, %s123
      %s140 = sphi 0, %s124
    $region4: #{tpu_custom_call.1} parent=1 // loop_header_branch
      %15 = sbr.rel (%p13) target = $region8
    $region5: #{tpu_custom_call.1} parent=1 // loop_body
      %s17 = ssub.s32 %s12, 1
      %s18 = ssub.s32 %s12, 2
      %s28 = sadd.s32 1, %s21
      %p29 = scmp.ge.s32.totalorder %s28, 3
      %s30 = scalar_select %p29, 0, %s28
      %s31 = sadd.s32 1, %s20
      %s32 = scalar_select %p29, %s31, %s20
      %p33 = scmp.ge.s32.totalorder %s32, 1
      %s34 = scalar_select %p33, 0, %s32
      %s35 = sadd.s32 1, %s19
      %s36 = scalar_select %p33, %s35, %s19
      %p37 = scmp.ge.s32.totalorder %s36, 2
      %s38 = scalar_select %p37, 0, %s36
      %s39 = ssub.s32 %s19, %s38
      %s40 = ssub.s32 %s20, %s34
      %s41 = sor.u32 %s39, %s40
      %p42 = scmp.eq.s32.totalorder %s41, 0
      %s44 = sadd.s32 %s43, 1
      %s45 = scalar_select %p42, %s43, %s44
      %p48 = pneg %p42
      %p49 = scmp.eq.s32.totalorder %s12, 5
      %p50 = por %p48, %p49
      %p51 = scmp.ne.s32.totalorder %s43, %s46
      %p52 = scmp.eq.s32.totalorder %s12, 0
      %p53 = por %p51, %p52
      %p54 = scmp.ne.s32.totalorder %s43, %s46
      %p55 = scmp.eq.s32.totalorder %s17, 5
      %p56 = por %p54, %p55
      %p57 = scmp.ne.s32.totalorder %s46, %s47
      %p58 = scmp.eq.s32.totalorder %s17, 0
      %p59 = por %p57, %p58
      %p60 = scmp.ne.s32.totalorder %s46, %s47
      %p61 = scmp.eq.s32.totalorder %s18, 5
      %p62 = por %p60, %p61
      %p64 = scmp.ne.s32.totalorder %s47, %s63
      %p65 = scmp.eq.s32.totalorder %s18, 0
      %p66 = por %p64, %p65
      %s68 = sadd.s32 %s67, 1
      %p71 = scmp.eq.s32.totalorder %s12, 5
      %p72 = scmp.ne.s32.totalorder %s67, %s69
      %p73 = scmp.eq.s32.totalorder %s12, 0
      %p74 = por %p72, %p73
      %p75 = scmp.ne.s32.totalorder %s67, %s69
      %p76 = scmp.eq.s32.totalorder %s17, 5
      %p77 = por %p75, %p76
      %p78 = scmp.ne.s32.totalorder %s69, %s70
      %p79 = scmp.eq.s32.totalorder %s17, 0
      %p80 = por %p78, %p79
      %p81 = scmp.ne.s32.totalorder %s69, %s70
      %p82 = scmp.eq.s32.totalorder %s18, 5
      %p83 = por %p81, %p82
      %p85 = scmp.ne.s32.totalorder %s70, %s84
      %p86 = scmp.eq.s32.totalorder %s18, 0
      %p87 = por %p85, %p86
      %s88 = ssub.s32 %s19, %s38
      %p89 = scmp.eq.s32.totalorder %s88, 0
      %s91 = sadd.s32 %s90, 1
      %s92 = scalar_select %p89, %s90, %s91
      %p95 = pneg %p89
      %p96 = scmp.eq.s32.totalorder %s12, 5
      %p97 = por %p95, %p96
      %p98 = scmp.ne.s32.totalorder %s90, %s93
      %p99 = scmp.eq.s32.totalorder %s12, 0
      %p100 = por %p98, %p99
      %p101 = scmp.ne.s32.totalorder %s90, %s93
      %p102 = scmp.eq.s32.totalorder %s17, 5
      %p103 = por %p101, %p102
      %p104 = scmp.ne.s32.totalorder %s93, %s94
      %p105 = scmp.eq.s32.totalorder %s17, 0
      %p106 = por %p104, %p105
      %p107 = scmp.ne.s32.totalorder %s93, %s94
      %p108 = scmp.eq.s32.totalorder %s18, 5
      %p109 = por %p107, %p108
      %p111 = scmp.ne.s32.totalorder %s94, %s110
      %p112 = scmp.eq.s32.totalorder %s18, 0
      %p113 = por %p111, %p112
      %s114 = ssub.s32 %s19, %s38
      %s115 = ssub.s32 %s21, %s30
      %s116 = sor.u32 %s114, %s115
      %s117 = ssub.s32 %s20, %s34
      %s118 = sor.u32 %s116, %s117
      %p119 = scmp.eq.s32.totalorder %s118, 0
      %s121 = sadd.s32 %s120, 1
      %s122 = scalar_select %p119, %s120, %s121
      %p125 = pneg %p119
      %p126 = scmp.eq.s32.totalorder %s12, 5
      %p127 = por %p125, %p126
      %p128 = scmp.ne.s32.totalorder %s120, %s123
      %p129 = scmp.eq.s32.totalorder %s12, 0
      %p130 = por %p128, %p129
      %p131 = scmp.ne.s32.totalorder %s120, %s123
      %p132 = scmp.eq.s32.totalorder %s17, 5
      %p133 = por %p131, %p132
      %p134 = scmp.ne.s32.totalorder %s123, %s124
      %p135 = scmp.eq.s32.totalorder %s17, 0
      %p136 = por %p134, %p135
      %p137 = scmp.ne.s32.totalorder %s123, %s124
      %p138 = scmp.eq.s32.totalorder %s18, 5
      %p139 = por %p137, %p138
      %p141 = scmp.ne.s32.totalorder %s124, %s140
      %p142 = scmp.eq.s32.totalorder %s18, 0
      %p143 = por %p141, %p142
      %p144 = scmp.le.s32.totalorder 1, %s12
      %p145 = scmp.lt.s32.totalorder %s12, 7
      %p146 = pnand %p144, %p145
      %p147 = pneg %p146
      // Predicated region
      $region9: #{tpu_custom_call.1} parent=5 // pred_check
        _
      $region10: #{tpu_custom_call.1} parent=5 // pred_check_branch
        %149 = sbr.rel (%p146) target = $region12
      $region11: #{tpu_custom_call.1} parent=5 // pred_region
        %s150 = ssub.s32 %s12, 1
        // Predicated region
        $region13: #{tpu_custom_call.1} parent=11 // pred_check
          %p151 = pneg %p80
        $region14: #{tpu_custom_call.1} parent=11 // pred_check_branch
          %153 = sbr.rel (%p151) target = $region16
        $region15: #{tpu_custom_call.1} parent=11 // pred_region
          _
        $region16: #{tpu_custom_call.1} parent=11 // pred_fallthru
          _
      $region12: #{tpu_custom_call.1} parent=5 // pred_fallthru
        _
      %p154 = scmp.lt.s32.totalorder %s12, 6
      // Predicated region
      $region17: #{tpu_custom_call.1} parent=5 // pred_check
        %p155 = pneg %p154
      $region18: #{tpu_custom_call.1} parent=5 // pred_check_branch
        %157 = sbr.rel (%p155) target = $region20
      $region19: #{tpu_custom_call.1} parent=5 // pred_region
        // Predicated region
        $region21: #{tpu_custom_call.1} parent=19 // pred_check
          %p158 = pneg %p53
        $region22: #{tpu_custom_call.1} parent=19 // pred_check_branch
          %160 = sbr.rel (%p158) target = $region24
        $region23: #{tpu_custom_call.1} parent=19 // pred_region
          %p161 = scmp.lt.s32.totalorder %s19, 1
          %s162 = scalar_select %p161, %s19, 1
          %p163 = scmp.lt.s32.totalorder %s20, 0
          %s164 = scalar_select %p163, %s20, 0
          %s165 = sadd.s32 %s164, %s162
          %s166 = smul.addr %s165, 8
          %s167 = scalar_lea.vmem %s0, %s166
        $region24: #{tpu_custom_call.1} parent=19 // pred_fallthru
          _
        // Predicated region
        $region25: #{tpu_custom_call.1} parent=19 // pred_check
          %p168 = pneg %p100
        $region26: #{tpu_custom_call.1} parent=19 // pred_check_branch
          %170 = sbr.rel (%p168) target = $region28
        $region27: #{tpu_custom_call.1} parent=19 // pred_region
          %p171 = scmp.lt.s32.totalorder %s19, 1
          %s172 = scalar_select %p171, %s19, 1
          %s173 = smul.addr %s172, 16
          %s174 = smul.addr %s173, 8
          %s175 = scalar_lea.vmem %s2, %s174
        $region28: #{tpu_custom_call.1} parent=19 // pred_fallthru
          _
      $region20: #{tpu_custom_call.1} parent=5 // pred_fallthru
        _
      %p176 = scmp.le.s32.totalorder 1, %s12
      %p177 = scmp.lt.s32.totalorder %s12, 7
      %p178 = pnand %p176, %p177
      %p179 = pneg %p178
      // Predicated region
      $region29: #{tpu_custom_call.1} parent=5 // pred_check
        _
      $region30: #{tpu_custom_call.1} parent=5 // pred_check_branch
        %181 = sbr.rel (%p178) target = $region32
      $region31: #{tpu_custom_call.1} parent=5 // pred_region
        %s182 = ssub.s32 %s12, 1
        %p183 = scmp.lt.s32.totalorder %s22, 1
        %s184 = scalar_select %p183, %s22, 1
        %p185 = scmp.lt.s32.totalorder %s23, 0
        %s186 = scalar_select %p185, %s23, 0
        %s187 = sadd.s32 %s186, %s184
        %s188 = smul.addr %s187, 8
        %s189 = scalar_lea.vmem %s0, %s188
        %p190 = pneg %p59
        %p191 = pneg %p56
        %p192 = pneg %p80
        %p193 = pneg %p77
        %p194 = scmp.lt.s32.totalorder %s22, 1
        %s195 = scalar_select %p194, %s22, 1
        %s196 = smul.addr %s195, 16
        %s197 = smul.addr %s196, 8
        %s198 = scalar_lea.vmem %s2, %s197
        %p199 = pneg %p106
        %p200 = pneg %p103
        %p201 = pneg %p136
        %p202 = pneg %p133
        %s203 = sand.u32 %s123, 1
        %s204 = scalar_lea.sflag [#allocation3], %s203
        %s205 = sand.u32 %s123, 1
        %s206 = smul.addr %s205, 8
        %s207 = scalar_lea.vmem [#allocation2], %s206
        %p208 = scmp.lt.s32.totalorder %s22, 1
        %s209 = scalar_select %p208, %s22, 1
        %p210 = scmp.lt.s32.totalorder %s23, 0
        %s211 = scalar_select %p210, %s23, 0
        %s212 = sadd.s32 %s211, %s209
        %s213 = smul.addr %s212, 8
        %s214 = scalar_lea.vmem %s0, %s213
        %p215 = scmp.lt.s32.totalorder %s22, 1
        %s216 = scalar_select %p215, %s22, 1
        %s217 = smul.addr %s216, 16
        %s218 = smul.addr %s217, 8
        %s219 = scalar_lea.vmem %s2, %s218
        %v220 = vld [vmem:[%s214] sm:$0xff]
        %s221 = smul.u32 %s24, 32
        %s222 = scalar_lea.vmem %s1, %s221
        %v223 = vld [vmem:[%s222] sm:$0xff]
        %v224 = vld [vmem:[%s222 + $0x8] sm:$0xff]
        %v225 = vld [vmem:[%s222 + $0x10] sm:$0xff]
        %v226 = vld [vmem:[%s222 + $0x18] sm:$0xff]
        %vm227 = vcmask 261120
        %v229 = vsel %vm227, %v220, 0
        %231 = vmatprep.subr.mxu0 0.0
        %232 = vmatpush1.msra.mxu0 0.0
        %233 = vmatprep.subr.mxu0 0.0
        %234 = vmatpush1.msra.mxu0 0.0
        %235 = vmatprep.subr.mxu0 0.0
        %236 = vmatpush1.msra.mxu0 0.0
        %237 = vmatprep.subr.mxu0 0.0
        %238 = vmatpush1.msra.mxu0 0.0
        %239 = vmatprep.subr.mxu0 0.0
        %240 = vmatpush1.msra.mxu0 0.0
        %241 = vmatprep.subr.mxu0 0.0
        %242 = vmatpush1.msra.mxu0 0.0
        %243 = vmatprep.subr.mxu0 0.0
        %244 = vmatpush1.msra.mxu0 0.0
        %245 = vmatprep.subr.mxu0 0.0
        %246 = vmatpush1.msra.mxu0 0.0
        %247 = vmatprep.subr.mxu0 0.0
        %248 = vmatpush1.msra.mxu0 0.0
        %249 = vmatprep.subr.mxu0 0.0
        %250 = vmatpush1.msra.mxu0 0.0
        %251 = vmatprep.subr.mxu0 0.0
        %252 = vmatpush1.msra.mxu0 0.0
        %253 = vmatprep.subr.mxu0 0.0
        %254 = vmatpush1.msra.mxu0 0.0
        %255 = vmatprep.subr.mxu0 0.0
        %256 = vmatpush1.msra.mxu0 %v226
        %257 = vmatprep.subr.mxu0 0.0
        %258 = vmatpush1.msra.mxu0 %v225
        %259 = vmatprep.subr.mxu0 0.0
        %260 = vmatpush1.msra.mxu0 %v224
        %261 = vmatprep.subr.mxu0 0.0
        %262 = vmatpush1.msra.mxu0 %v223
        %263 = vmatprep.subr.mxu0 0.0
        %264 = vmatpush2.msra.mxu0 0.0
        %265 = vmatprep.subr.mxu0 0.0
        %266 = vmatpush2.msra.mxu0 0.0
        %267 = vmatprep.subr.mxu0 0.0
        %268 = vmatpush2.msra.mxu0 0.0
        %269 = vmatprep.subr.mxu0 0.0
        %270 = vmatpush2.msra.mxu0 0.0
        %271 = vmatprep.subr.mxu0 0.0
        %272 = vmatpush2.msra.mxu0 0.0
        %273 = vmatprep.subr.mxu0 0.0
        %274 = vmatpush2.msra.mxu0 0.0
        %275 = vmatprep.subr.mxu0 0.0
        %276 = vmatpush2.msra.mxu0 0.0
        %277 = vmatprep.subr.mxu0 0.0
        %278 = vmatpush2.msra.mxu0 0.0
        %279 = vmatprep.subr.mxu0 0.0
        %280 = vmatpush2.msra.mxu0 0.0
        %281 = vmatprep.subr.mxu0 0.0
        %282 = vmatpush2.msra.mxu0 0.0
        %283 = vmatprep.subr.mxu0 0.0
        %284 = vmatpush2.msra.mxu0 0.0
        %285 = vmatprep.subr.mxu0 0.0
        %286 = vmatpush2.msra.mxu0 0.0
        %287 = vmatprep.subr.mxu0 0.0
        %288 = vmatpush2.msra.mxu0 0.0
        %289 = vmatprep.subr.mxu0 0.0
        %290 = vmatpush2.msra.mxu0 0.0
        %291 = vmatprep.subr.mxu0 0.0
        %292 = vmatpush2.msra.mxu0 0.0
        %293 = vmatprep.subr.mxu0 0.0
        %294 = vmatpush2.msra.mxu0 0.0
        %295 = vmatprep.mubr.f32.mxu0 0.0
        %296 = vmatmul.mubr.f32.gmra.mxu0 %v229
        %v297 = vpop.f32.mrf.mxu0
        %v298 = vadd.f32 0.0, %v297
        %v299 = vpop.f32.mrf.mxu0
        %300 = vdwg.mxu0
        %v301 = vld [vmem:[%s219] sm:$0xff]
        %v302 = vld [vmem:[%s219 + $0x8] sm:$0xff]
        %v303 = vld [vmem:[%s219 + $0x10] sm:$0xff]
        %v304 = vld [vmem:[%s219 + $0x18] sm:$0xff]
        %v305 = vld [vmem:[%s219 + $0x20] sm:$0xff]
        %v306 = vld [vmem:[%s219 + $0x28] sm:$0xff]
        %v307 = vld [vmem:[%s219 + $0x30] sm:$0xff]
        %v308 = vld [vmem:[%s219 + $0x38] sm:$0xff]
        %v309 = vld [vmem:[%s219 + $0x40] sm:$0xff]
        %v310 = vld [vmem:[%s219 + $0x48] sm:$0xff]
        %v311 = vld [vmem:[%s219 + $0x50] sm:$0xff]
        %v312 = vld [vmem:[%s219 + $0x58] sm:$0xff]
        %v313 = vld [vmem:[%s219 + $0x60] sm:$0xff]
        %v314 = vld [vmem:[%s219 + $0x68] sm:$0xff]
        %v315 = vld [vmem:[%s219 + $0x70] sm:$0xff]
        %v316 = vld [vmem:[%s219 + $0x78] sm:$0xff]
        %v318 = vsel %vm227, %v298, 0
        %v321 = vsel %vm227, %v301, 0
        %v324 = vsel %vm227, %v302, 0
        %v327 = vsel %vm227, %v303, 0
        %v330 = vsel %vm227, %v304, 0
        %v333 = vsel %vm227, %v305, 0
        %v336 = vsel %vm227, %v306, 0
        %v339 = vsel %vm227, %v307, 0
        %v342 = vsel %vm227, %v308, 0
        %v345 = vsel %vm227, %v309, 0
        %v348 = vsel %vm227, %v310, 0
        %v351 = vsel %vm227, %v311, 0
        %v354 = vsel %vm227, %v312, 0
        %v357 = vsel %vm227, %v313, 0
        %v360 = vsel %vm227, %v314, 0
        %v363 = vsel %vm227, %v315, 0
        %v366 = vsel %vm227, %v316, 0
        %368 = vmatprep.subr.mxu0 0.0
        %369 = vmatpush1.xpose.msra.mxu0 %v366
        %370 = vmatprep.subr.mxu0 0.0
        %371 = vmatpush1.xpose.msra.mxu0 %v363
        %372 = vmatprep.subr.mxu0 0.0
        %373 = vmatpush1.xpose.msra.mxu0 %v360
        %374 = vmatprep.subr.mxu0 0.0
        %375 = vmatpush1.xpose.msra.mxu0 %v357
        %376 = vmatprep.subr.mxu0 0.0
        %377 = vmatpush1.xpose.msra.mxu0 %v354
        %378 = vmatprep.subr.mxu0 0.0
        %379 = vmatpush1.xpose.msra.mxu0 %v351
        %380 = vmatprep.subr.mxu0 0.0
        %381 = vmatpush1.xpose.msra.mxu0 %v348
        %382 = vmatprep.subr.mxu0 0.0
        %383 = vmatpush1.xpose.msra.mxu0 %v345
        %384 = vmatprep.subr.mxu0 0.0
        %385 = vmatpush1.xpose.msra.mxu0 %v342
        %386 = vmatprep.subr.mxu0 0.0
        %387 = vmatpush1.xpose.msra.mxu0 %v339
        %388 = vmatprep.subr.mxu0 0.0
        %389 = vmatpush1.xpose.msra.mxu0 %v336
        %390 = vmatprep.subr.mxu0 0.0
        %391 = vmatpush1.xpose.msra.mxu0 %v333
        %392 = vmatprep.subr.mxu0 0.0
        %393 = vmatpush1.xpose.msra.mxu0 %v330
        %394 = vmatprep.subr.mxu0 0.0
        %395 = vmatpush1.xpose.msra.mxu0 %v327
        %396 = vmatprep.subr.mxu0 0.0
        %397 = vmatpush1.xpose.msra.mxu0 %v324
        %398 = vmatprep.subr.mxu0 0.0
        %399 = vmatpush1.xpose.msra.mxu0 %v321
        %400 = vmatprep.subr.mxu0 0.0
        %401 = vmatpush2.xpose.msra.mxu0 0.0
        %402 = vmatprep.subr.mxu0 0.0
        %403 = vmatpush2.xpose.msra.mxu0 0.0
        %404 = vmatprep.subr.mxu0 0.0
        %405 = vmatpush2.xpose.msra.mxu0 0.0
        %406 = vmatprep.subr.mxu0 0.0
        %407 = vmatpush2.xpose.msra.mxu0 0.0
        %408 = vmatprep.subr.mxu0 0.0
        %409 = vmatpush2.xpose.msra.mxu0 0.0
        %410 = vmatprep.subr.mxu0 0.0
        %411 = vmatpush2.xpose.msra.mxu0 0.0
        %412 = vmatprep.subr.mxu0 0.0
        %413 = vmatpush2.xpose.msra.mxu0 0.0
        %414 = vmatprep.subr.mxu0 0.0
        %415 = vmatpush2.xpose.msra.mxu0 0.0
        %416 = vmatprep.subr.mxu0 0.0
        %417 = vmatpush2.xpose.msra.mxu0 0.0
        %418 = vmatprep.subr.mxu0 0.0
        %419 = vmatpush2.xpose.msra.mxu0 0.0
        %420 = vmatprep.subr.mxu0 0.0
        %421 = vmatpush2.xpose.msra.mxu0 0.0
        %422 = vmatprep.subr.mxu0 0.0
        %423 = vmatpush2.xpose.msra.mxu0 0.0
        %424 = vmatprep.subr.mxu0 0.0
        %425 = vmatpush2.xpose.msra.mxu0 0.0
        %426 = vmatprep.subr.mxu0 0.0
        %427 = vmatpush2.xpose.msra.mxu0 0.0
        %428 = vmatprep.subr.mxu0 0.0
        %429 = vmatpush2.xpose.msra.mxu0 0.0
        %430 = vmatprep.subr.mxu0 0.0
        %431 = vmatpush2.xpose.msra.mxu0 0.0
        %432 = vmatprep.mubr.f32.mxu0 0.0
        %433 = vmatmul.mubr.f32.gmra.mxu0 %v318
        %v434 = vpop.f32.mrf.mxu0
        %v435 = vadd.f32 0.0, %v434
        %v436 = vpop.f32.mrf.mxu0
        %437 = vdwg.mxu0
        %438 = vst [vmem:[%s207] sm:$0xff] %v435
        %s439 = sand.u32 %s123, 1
        %s440 = scalar_lea.sflag [#allocation3], %s439
        %s441 = sand.u32 %s123, 1
        %s442 = smul.addr %s441, 8
        %s443 = scalar_lea.vmem [#allocation2], %s442
        // Predicated region
        $region33: #{tpu_custom_call.1} parent=31 // pred_check
          %p444 = pneg %p133
        $region34: #{tpu_custom_call.1} parent=31 // pred_check_branch
          %446 = sbr.rel (%p444) target = $region36
        $region35: #{tpu_custom_call.1} parent=31 // pred_region
          %s448 = ssub.s32 128, 128
          %449 = vsyncadd %s440, %s448
          %s450 = sadd.s32 %s23, %s24
          %s451 = smul.addr %s22, 3
          %s452 = sadd.s32 %s450, %s451
          %s453 = smul.addr %s452, 128
          %s454 = scalar_lea.hbm %s3, %s453
          %s456 = sshll.u32 %s443, 4
          %s457 = int_to_ptr.vmem [resolvable:$true] %s456
          %459 = dma.vmem_to_hbm [thread:$0]  %s457, 128, %s454, %s440
        $region36: #{tpu_custom_call.1} parent=31 // pred_fallthru
          _
      $region32: #{tpu_custom_call.1} parent=5 // pred_fallthru
        _
      %p460 = scmp.le.s32.totalorder 2, %s12
      // Predicated region
      $region37: #{tpu_custom_call.1} parent=5 // pred_check
        %p461 = pneg %p460
      $region38: #{tpu_custom_call.1} parent=5 // pred_check_branch
        %463 = sbr.rel (%p461) target = $region40
      $region39: #{tpu_custom_call.1} parent=5 // pred_region
        %s464 = ssub.s32 %s12, 2
        // Predicated region
        $region41: #{tpu_custom_call.1} parent=39 // pred_check
          %p465 = pneg %p139
        $region42: #{tpu_custom_call.1} parent=39 // pred_check_branch
          %467 = sbr.rel (%p465) target = $region44
        $region43: #{tpu_custom_call.1} parent=39 // pred_region
          %s468 = sand.u32 %s124, 1
          %s469 = scalar_lea.sflag [#allocation3], %s468
          %s470 = sand.u32 %s124, 1
          %s471 = smul.addr %s470, 8
          %s472 = scalar_lea.vmem [#allocation2], %s471
          %473 = dma.done %s469, 128
        $region44: #{tpu_custom_call.1} parent=39 // pred_fallthru
          _
      $region40: #{tpu_custom_call.1} parent=5 // pred_fallthru
        _
    $region6: #{tpu_custom_call.1} parent=1 // loop_footer
      %s16 = sadd.s32 1, %s12
    $region7: #{tpu_custom_call.1} parent=1 // loop_footer_branch
      %11 = sbr.rel target = $region3
    $region8: #{tpu_custom_call.1} parent=1 // loop_exit
      _
    %474 = vsyncpa [#allocation3], 1
    %s475 = scalar_lea.sflag [#allocation3], 1
    %476 = vsyncpa %s475, 1

</llo_original>
